<compile_context>
chip_gen: v7x
topology: tpu7x:2x2x1
jax: 0.10.0
libtpu: 0.0.40
codegen_flags: <defaults>
</compile_context>

<pallas_src>
import functools

import jax
import jax.numpy as jnp
from jax.experimental import pallas as pl
from jax.experimental.pallas import tpu as pltpu


def _conv_mm_kernel(w_ref, p_ref, o_ref, *, use_relu):
    # One MXU matmul with bias folded into the contraction (ones row in p, bias column
    # in w): [C_out, CKK+1] @ [CKK+1, tn] -> [C_out, tn]. bf16 operands, f32 accumulate,
    # optional fused ReLU, lane-dense store.
    acc = jnp.dot(w_ref[...], p_ref[...], preferred_element_type=jnp.float32)
    if use_relu:
        acc = jnp.maximum(acc, 0.0)
    o_ref[...] = acc.astype(o_ref.dtype)


@functools.partial(jax.jit, static_argnames=("stride", "padding", "use_relu"))
def embedding_net_forward(x, weight, bias, *, stride, padding, use_relu):
    """Forward pass of EmbeddingNet.

    x:      [N, C_in, H, W]        (NCHW, like PyTorch)
    weight: [C_out, C_in, K, K]    (OIHW, like PyTorch)
    bias:   [C_out]
    """
    N, C, H, W = x.shape
    C_out, _, K, _ = weight.shape
    Ho = (H + 2 * padding - K) // stride + 1
    Wo = (W + 2 * padding - K) // stride + 1
    M = N * Ho * Wo
    CKK = C * K * K
    CKK1 = CKK + 1  # +1 for the folded-bias "ones" row

    # Lane tile along M: single block at small sizes (the common case here); if M ever
    # scales, grow tn (bigger lane tiles) before adding grid steps.
    TN_MAX = 8192
    tn = 128 * pl.cdiv(min(M, TN_MAX), 128)
    M_pad = tn * pl.cdiv(M, tn)

    # --- im2col: single layout pass producing the TRANSPOSED patch matrix [CKK, M].
    # Row order (c, kh, kw) matches torch's weight.reshape(C_out, C_in*K*K) flattening;
    # column order (n, ho, wo) makes the output reshape trivial. Under jit this is one
    # XLA fusion feeding the custom call.
    # TODO(synk): fully in-kernel im2col (pass padded x as a VMEM operand, 9 strided
    # taps + relayout inside the kernel) would avoid the patches HBM round trip, but
    # the stride-2 gathers / multi-dim VMEM relayouts have shaky Mosaic lowering.
    xp = jnp.pad(x, ((0, 0), (0, 0), (padding, padding), (padding, padding)))
    taps = [
        xp[:, :, kh:kh + stride * Ho:stride, kw:kw + stride * Wo:stride]
        for kh in range(K) for kw in range(K)
    ]
    patches_t = (
        jnp.stack(taps, axis=2)          # [N, C, K*K, Ho, Wo]
        .transpose(1, 2, 0, 3, 4)        # [C, K*K, N, Ho, Wo]
        .reshape(CKK, M)
    )
    # Fold bias into the matmul: append a ones row (bias column goes on the weight).
    patches_t = jnp.concatenate(
        [patches_t, jnp.ones((1, M), patches_t.dtype)], axis=0
    ).astype(jnp.bfloat16)                                  # [CKK+1, M] bf16
    if M_pad != M:
        patches_t = jnp.pad(patches_t, ((0, 0), (0, M_pad - M)))

    w_aug = jnp.concatenate(
        [weight.reshape(C_out, CKK), bias.reshape(C_out, 1)], axis=1
    ).astype(jnp.bfloat16)                                  # [C_out, CKK+1] bf16

    grid = (M_pad // tn,)
    # Only worth sharding across v7x's two TensorCores when per-step work is non-trivial.
    sem = "parallel" if grid[0] >= 4 else "arbitrary"

    cost = pl.CostEstimate(
        flops=2 * C_out * CKK1 * M_pad,
        transcendentals=0,
        bytes_accessed=(C_out * CKK1 * 2) + (CKK1 * M_pad * 2) + (C_out * M_pad * 4),
    )

    out2d = pl.pallas_call(
        functools.partial(_conv_mm_kernel, use_relu=use_relu),
        out_shape=jax.ShapeDtypeStruct((C_out, M_pad), jnp.float32),
        grid=grid,
        in_specs=[
            pl.BlockSpec((C_out, CKK1), lambda i: (0, 0)),   # full augmented weight (resident)
            pl.BlockSpec((CKK1, tn), lambda i: (0, i)),      # patch lane-tile
        ],
        out_specs=pl.BlockSpec((C_out, tn), lambda i: (0, i)),
        compiler_params=pltpu.CompilerParams(dimension_semantics=(sem,)),
        cost_estimate=cost,
    )(w_aug, patches_t)

    out = out2d[:, :M].reshape(C_out, N, Ho, Wo).transpose(1, 0, 2, 3)  # back to NCHW
    # Matches torch `.squeeze()`: drops ALL size-1 dims (including batch when N == 1).
    return jnp.squeeze(out)


def _reference_forward(x, weight, bias, *, stride, padding, use_relu):
    out = jax.lax.conv_general_dilated(
        x.astype(jnp.float32),
        weight.astype(jnp.float32),
        window_strides=(stride, stride),
        padding=[(padding, padding), (padding, padding)],
        dimension_numbers=("NCHW", "OIHW", "NCHW"),
    )
    out = out + bias.reshape(1, -1, 1, 1)
    if use_relu:
        out = jnp.maximum(out, 0.0)
    return jnp.squeeze(out)


if __name__ == "__main__":
    # Module hyperparameters (EmbeddingNet.__init__)
    input_depth = 4
    layer1_stride = 2
    layer1_kernel_size = 3
    layer1_output_channels = 8
    layer1_padding = 1
    use_relu = True

    # Deterministic parameters and input.
    key = jax.random.PRNGKey(0)
    kx, kw, kb = jax.random.split(key, 3)
    x = jax.random.normal(kx, (2, input_depth, 16, 16), dtype=jnp.float32)
    weight = 0.1 * jax.random.normal(
        kw,
        (layer1_output_channels, input_depth, layer1_kernel_size, layer1_kernel_size),
        dtype=jnp.float32,
    )
    bias = 0.1 * jax.random.normal(kb, (layer1_output_channels,), dtype=jnp.float32)

    out = embedding_net_forward(
        x, weight, bias,
        stride=layer1_stride, padding=layer1_padding, use_relu=use_relu,
    )
    out = jax.block_until_ready(out)

    ref = _reference_forward(
        x, weight, bias,
        stride=layer1_stride, padding=layer1_padding, use_relu=use_relu,
    )
    assert out.shape == ref.shape, (out.shape, ref.shape)
    # bf16 MXU operands (f32 accumulation) -> slightly looser tolerance vs f32 reference.
    assert jnp.allclose(out, ref, atol=2e-2, rtol=2e-2), "mismatch vs reference conv"

    print("KERNEL_OK")
</pallas_src>

<mosaic_0001>
module attributes {stable_mosaic.version = 11 : i64} {
  func.func @_conv_mm_kernel(%arg0: i32, %arg1: memref<8x37xbf16, #tpu.memory_space<vmem>>, %arg2: memref<37x128xbf16, #tpu.memory_space<vmem>>, %arg3: memref<8x128xf32, #tpu.memory_space<vmem>>) attributes {dimension_semantics = [#tpu.dimension_semantics<arbitrary>], iteration_bounds = array<i64: 1>, scalar_prefetch = 0 : i64, scratch_operands = 0 : i64, tpu.core_type = #tpu.core_type<tc>, window_params = [{pipeline_mode = #tpu.pipeline_mode<synchronous>, transform_indices = @transform_0, window_bounds = array<i64: 8, 37>}, {transform_indices = @transform_1, window_bounds = array<i64: 37, 128>}, {transform_indices = @transform_2, window_bounds = array<i64: 8, 128>}]} {
    %c0 = arith.constant 0 : index
    %c0_0 = arith.constant 0 : index
    %0 = vector.load %arg1[%c0, %c0_0] : memref<8x37xbf16, #tpu.memory_space<vmem>>, vector<8x37xbf16>
    %c0_1 = arith.constant 0 : index
    %c0_2 = arith.constant 0 : index
    %1 = vector.load %arg2[%c0_1, %c0_2] : memref<37x128xbf16, #tpu.memory_space<vmem>>, vector<37x128xbf16>
    %cst = arith.constant dense<0.000000e+00> : vector<8x128xf32>
    %2 = tpu.matmul %0, %1, %cst {dimension_numbers = #tpu.dot_dimension_numbers<[1], [0], [0], [1], [0, 0, 1, 1], [], []>} : vector<8x37xbf16>, vector<37x128xbf16>, vector<8x128xf32> -> vector<8x128xf32>
    %cst_3 = arith.constant 0.000000e+00 : f32
    %3 = vector.broadcast %cst_3 : f32 to vector<8x128xf32>
    %4 = arith.maximumf %2, %3 : vector<8x128xf32>
    %c0_4 = arith.constant 0 : index
    %c0_5 = arith.constant 0 : index
    %5 = vector.load %arg3[%c0_4, %c0_5] : memref<8x128xf32, #tpu.memory_space<vmem>>, vector<8x128xf32>
    tpu.vector_store %arg3[%c0_4, %c0_5], %4 {strides = array<i32>} : memref<8x128xf32, #tpu.memory_space<vmem>>, vector<8x128xf32>,
    return
  }
  func.func @transform_0(%arg0: i32) -> (i32, i32) {
    %c0_i32 = arith.constant 0 : i32
    %c0_i32_0 = arith.constant 0 : i32
    %c0_i32_1 = arith.constant 0 : i32
    return %c0_i32, %c0_i32_0 : i32, i32
  }
  func.func @transform_1(%arg0: i32) -> (i32, i32) {
    %c0_i32 = arith.constant 0 : i32
    %c0_i32_0 = arith.constant 0 : i32
    return %c0_i32, %arg0 : i32, i32
  }
  func.func @transform_2(%arg0: i32) -> (i32, i32) {
    %c0_i32 = arith.constant 0 : i32
    %c0_i32_0 = arith.constant 0 : i32
    return %c0_i32, %arg0 : i32, i32
  }
}

</mosaic_0001>

<llo_original>
// kernel: embedding_net_forward.1
$region0: #{embedding_net_forward.1}
  #allocation0 [shape = 'u32[]', space=smem, size = 0x4, offset = 0x4, fixed_abs, tag = 'smem constant byte address 0x4 - core index']
  #allocation1 [shape = 'u32[144,128]{1,0:T(1,128)}', space=vmem, size = 0x12000, scoped, tag = 'internal scratch']
  %s0 = inlined_call_operand.vmem [shape: bf16[8,37], index: 0, kind: input, shape index: {}]
  %s1 = inlined_call_operand.vmem [shape: bf16[37,128], index: 1, kind: input, shape index: {}]
  %s2 = inlined_call_operand.vmem [shape: f32[8,128], index: 2, kind: output, shape index: {}]
  %s3 = sld [smem:[#allocation0]]
  $region18: #{embedding_net_forward.1} parent=0
    _
  %s5 = ssub.s32 1, %s3
  %s6 = scalar_select 0, %s5, %s3
  // Predicated region
  $region2: #{embedding_net_forward.1} parent=0 // pred_check
    _
  $region3: #{embedding_net_forward.1} parent=0 // pred_check_branch
    %8 = sbr.rel (0) target = $region5
  $region4: #{embedding_net_forward.1} parent=0 // pred_region
    _
  $region5: #{embedding_net_forward.1} parent=0 // pred_fallthru
    _
  // Predicated region
  $region6: #{embedding_net_forward.1} parent=0 // pred_check
    _
  $region7: #{embedding_net_forward.1} parent=0 // pred_check_branch
    %10 = sbr.rel (0) target = $region9
  $region8: #{embedding_net_forward.1} parent=0 // pred_region
    _
  $region9: #{embedding_net_forward.1} parent=0 // pred_fallthru
    _
  %v12 = vld [vmem:[%s0] sm:$0xf]
  %v13 = vld [vmem:[%s1] sm:$0xf]
  %v14 = vld [vmem:[%s1 + $0x4] sm:$0xf]
  %v15 = vld [vmem:[%s1 + $0x8] sm:$0xf]
  %v16 = vld [vmem:[%s1 + $0xc] sm:$0xf]
  %v17 = vld [vmem:[%s1 + $0x10] sm:$0x7]
  %v23 = vunpack.c.l.b16 %v13
  %v24 = vunpack.c.l.b16 %v14
  %v25 = vunpack.c.l.b16 %v15
  %v26 = vunpack.c.l.b16 %v16
  %v27 = vunpack.c.l.b16 %v17
  %v28 = vpack.c.b16 %v24, %v23
  %v29 = vpack.c.b16 %v26, %v25
  %v30 = vpack.c.b16 %v27, %v27
  %vm33 = vcmask 302080
  %v35 = vsel %vm33, %v12, 0
  %vm37 = vcmask 1041408
  %vm38 = vcmask 1042432
  %v39 = vsel %vm37, 4294967295, 65535
  %v40 = vsel %vm38, %v39, 0
  %v42 = vand.u32 %v30, %v40
  %44 = vmatprep.subr.bf16.mxu0 0
  %45 = vmatpush1.bf16.msra.mxu0 %v28
  %46 = vmatprep.subr.bf16.mxu0 0
  %47 = vmatpush1.bf16.msra.mxu0 %v29
  %48 = vmatprep.subr.bf16.mxu0 0
  %49 = vmatpush1.bf16.msra.mxu0 %v42
  %50 = vmatprep.subr.bf16.mxu0 0
  %51 = vmatpush1.bf16.msra.mxu0 0
  %52 = vmatprep.subr.bf16.mxu0 0
  %53 = vmatpush1.bf16.msra.mxu0 0
  %54 = vmatprep.subr.bf16.mxu0 0
  %55 = vmatpush1.bf16.msra.mxu0 0
  %56 = vmatprep.subr.bf16.mxu0 0
  %57 = vmatpush1.bf16.msra.mxu0 0
  %58 = vmatprep.subr.bf16.mxu0 0
  %59 = vmatpush1.bf16.msra.mxu0 0
  %60 = vmatprep.subr.bf16.mxu0 0
  %61 = vmatpush1.bf16.msra.mxu0 0
  %62 = vmatprep.subr.bf16.mxu0 0
  %63 = vmatpush1.bf16.msra.mxu0 0
  %64 = vmatprep.subr.bf16.mxu0 0
  %65 = vmatpush1.bf16.msra.mxu0 0
  %66 = vmatprep.subr.bf16.mxu0 0
  %67 = vmatpush1.bf16.msra.mxu0 0
  %68 = vmatprep.subr.bf16.mxu0 0
  %69 = vmatpush1.bf16.msra.mxu0 0
  %70 = vmatprep.subr.bf16.mxu0 0
  %71 = vmatpush1.bf16.msra.mxu0 0
  %72 = vmatprep.subr.bf16.mxu0 0
  %73 = vmatpush1.bf16.msra.mxu0 0
  %74 = vmatprep.subr.bf16.mxu0 0
  %75 = vmatpush1.bf16.msra.mxu0 0
  %76 = vmatprep.mubr.bf16.mxu0 0
  %77 = vmatmul.mubr.bf16.gmra.mrb[0].mxu0 %v35
  %v78 = vpop.f32.mrb[0].mxu0
  %v79 = vadd.f32 0.0, %v78
  %v80 = vpop.f32.mrb[0].mxu0
  %v81 = vpop.f32.mrb[0].mxu0
  %v82 = vpop.f32.mrb[0].mxu0
  %83 = vdwg.mxu0
  %v84 = vmax.f32 %v79, 0.0
  %85 = vst [vmem:[%s2] sm:$0xff] %v84
  // Predicated region
  $region10: #{embedding_net_forward.1} parent=0 // pred_check
    _
  $region11: #{embedding_net_forward.1} parent=0 // pred_check_branch
    %87 = sbr.rel (0) target = $region13
  $region12: #{embedding_net_forward.1} parent=0 // pred_region
    _
  $region13: #{embedding_net_forward.1} parent=0 // pred_fallthru
    _
  // Predicated region
  $region14: #{embedding_net_forward.1} parent=0 // pred_check
    _
  $region15: #{embedding_net_forward.1} parent=0 // pred_check_branch
    %89 = sbr.rel (0) target = $region17
  $region16: #{embedding_net_forward.1} parent=0 // pred_region
    _
  $region17: #{embedding_net_forward.1} parent=0 // pred_fallthru
    _

</llo_original>
